<compile_context>
chip_gen: v7x
topology: tpu7x:2x2x1
jax: 0.10.0
libtpu: 0.0.40
codegen_flags: <defaults>
</compile_context>

<pallas_src>
import jax
import jax.numpy as jnp
from jax.experimental import pallas as pl
from jax.experimental.pallas import tpu as pltpu


# ----------------------------------------------------------------------------
# Kernel: one fused two-layer MLP over a batch tile.
# ----------------------------------------------------------------------------
def simulator_kernel(
    s_ref,      # [bt, state_dim]            batch tile of state
    a_ref,      # [bt, action_dim]           batch tile of action
    w1s_ref,    # [state_dim, 3*hidden]      first-layer rows for state input
    w1a_ref,    # [action_dim, 3*hidden]     first-layer rows for action input
    b1_ref,     # [1, 3*hidden]
    w2_ref,     # [3*hidden, state_dim+2]    block-diagonal second layer
    b2_ref,     # [1, state_dim+2]
    out_ref,    # [bt, state_dim+2]          packed (state | reward | continue)
):
    # First layer: x @ W1 + b1, with x = [state, action] expressed as a sum of
    # two matmuls so the wrapper never materializes the concat in HBM.
    h = (
        jnp.dot(s_ref[...], w1s_ref[...], preferred_element_type=jnp.float32)
        + jnp.dot(a_ref[...], w1a_ref[...], preferred_element_type=jnp.float32)
        + b1_ref[...]
    )
    h = jnp.maximum(h, 0.0)  # ReLU (shared pass for all three MLPs)

    # Second layer: block-diagonal W2 produces all three heads in one matmul.
    out_ref[...] = (
        jnp.dot(h, w2_ref[...], preferred_element_type=jnp.float32) + b2_ref[...]
    ).astype(out_ref.dtype)


# ----------------------------------------------------------------------------
# One-time parameter packing (done at parameter-build time, not per call).
# ----------------------------------------------------------------------------
def pack_params(params):
    """Pack the 3 MLPs into fused weights.

    Raw params: weights [in, out], biases [1, out] (already transposed w.r.t.
    torch.nn.Linear's [out, in]).
    """
    state_dim = params["seq_w2"].shape[1]
    hidden = params["seq_w1"].shape[1]
    out_dim = state_dim + 2

    # First layer: concat output axes -> [in, 3*hidden]; split rows by input.
    w1 = jnp.concatenate(
        [params["seq_w1"], params["rew_w1"], params["con_w1"]], axis=1
    )
    b1 = jnp.concatenate(
        [params["seq_b1"], params["rew_b1"], params["con_b1"]], axis=1
    )

    # Second layer: block diagonal [3*hidden, state_dim+2].
    w2 = jnp.zeros((3 * hidden, out_dim), jnp.float32)
    w2 = w2.at[0:hidden, 0:state_dim].set(params["seq_w2"])
    w2 = w2.at[hidden:2 * hidden, state_dim:state_dim + 1].set(params["rew_w2"])
    w2 = w2.at[2 * hidden:3 * hidden, state_dim + 1:state_dim + 2].set(
        params["con_w2"]
    )
    b2 = jnp.concatenate(
        [params["seq_b2"], params["rew_b2"], params["con_b2"]], axis=1
    )

    return {
        "w1s": w1[:state_dim],        # [state_dim, 3*hidden]
        "w1a": w1[state_dim:],        # [action_dim, 3*hidden]
        "b1": b1,                     # [1, 3*hidden]
        "w2": w2,                     # [3*hidden, state_dim+2]
        "b2": b2,                     # [1, state_dim+2]
        "state_dim": state_dim,
        "hidden": hidden,
    }


# ----------------------------------------------------------------------------
# Wrapper: batch-tiled pallas_call, packed output sliced into the 3 heads.
# ----------------------------------------------------------------------------
def simulator_v1_forward(state, action, packed, *, block_batch=512):
    """Pallas equivalent of SimulatorV1.forward.

    state:  [B, state_dim]  float32
    action: [B, action_dim] float32
    packed: dict from pack_params(...)
    Returns (state_next_logits [B, state_dim],
             reward_logits     [B, 1],
             continue_logits   [B, 1])
    """
    state = state.astype(jnp.float32)
    action = action.astype(jnp.float32)

    B, state_dim = state.shape
    action_dim = action.shape[1]
    hidden3 = packed["b1"].shape[1]          # 3 * hidden
    out_dim = packed["w2"].shape[1]          # state_dim + 2

    # Batch tile: multiple of 8 sublanes, capped (keeps VMEM use tiny even on
    # v7x's 64 MiB while staying near the HBM roofline for large batches).
    bt = min(block_batch, pl.cdiv(B, 8) * 8)
    b_pad = pl.cdiv(B, bt) * bt
    if b_pad != B:
        pad = b_pad - B
        state = jnp.pad(state, ((0, pad), (0, 0)))
        action = jnp.pad(action, ((0, pad), (0, 0)))

    grid = (b_pad // bt,)

    batch_map = lambda i: (i, 0)
    const_map = lambda i: (0, 0)   # weights/biases resident across grid steps

    in_specs = [
        pl.BlockSpec((bt, state_dim), batch_map),
        pl.BlockSpec((bt, action_dim), batch_map),
        pl.BlockSpec((state_dim, hidden3), const_map),
        pl.BlockSpec((action_dim, hidden3), const_map),
        pl.BlockSpec((1, hidden3), const_map),
        pl.BlockSpec((hidden3, out_dim), const_map),
        pl.BlockSpec((1, out_dim), const_map),
    ]
    out_spec = pl.BlockSpec((bt, out_dim), batch_map)

    # Advisory cost estimate so XLA can overlap surrounding ops.
    in_dim = state_dim + action_dim
    flops = 2 * b_pad * (in_dim * hidden3 + hidden3 * out_dim)
    bytes_accessed = 4 * (
        b_pad * (in_dim + out_dim)
        + in_dim * hidden3 + hidden3
        + hidden3 * out_dim + out_dim
    )
    cost = pl.CostEstimate(
        flops=flops, transcendentals=0, bytes_accessed=bytes_accessed
    )

    packed_out = pl.pallas_call(
        simulator_kernel,
        out_shape=jax.ShapeDtypeStruct((b_pad, out_dim), jnp.float32),
        grid=grid,
        in_specs=in_specs,
        out_specs=out_spec,
        compiler_params=pltpu.CompilerParams(
            dimension_semantics=("parallel",),
        ),
        cost_estimate=cost,
    )(
        state, action,
        packed["w1s"], packed["w1a"], packed["b1"],
        packed["w2"], packed["b2"],
    )

    packed_out = packed_out[:B]
    state_next_logits = packed_out[:, :state_dim]
    reward_logits = packed_out[:, state_dim:state_dim + 1]
    continue_logits = packed_out[:, state_dim + 1:state_dim + 2]
    return state_next_logits, reward_logits, continue_logits


# ----------------------------------------------------------------------------
# Synthetic params + pure-JAX reference (unfused, matches torch semantics).
# ----------------------------------------------------------------------------
def init_params(key, state_dim, action_dim, hidden_dim):
    input_dim = state_dim + action_dim
    keys = jax.random.split(key, 12)

    def w(k, fan_in, fan_out):
        bound = 1.0 / jnp.sqrt(fan_in)
        return jax.random.uniform(k, (fan_in, fan_out), jnp.float32, -bound, bound)

    def b(k, fan_in, fan_out):
        bound = 1.0 / jnp.sqrt(fan_in)
        return jax.random.uniform(k, (1, fan_out), jnp.float32, -bound, bound)

    return {
        "seq_w1": w(keys[0], input_dim, hidden_dim),
        "seq_b1": b(keys[1], input_dim, hidden_dim),
        "seq_w2": w(keys[2], hidden_dim, state_dim),
        "seq_b2": b(keys[3], hidden_dim, state_dim),
        "rew_w1": w(keys[4], input_dim, hidden_dim),
        "rew_b1": b(keys[5], input_dim, hidden_dim),
        "rew_w2": w(keys[6], hidden_dim, 1),
        "rew_b2": b(keys[7], hidden_dim, 1),
        "con_w1": w(keys[8], input_dim, hidden_dim),
        "con_b1": b(keys[9], input_dim, hidden_dim),
        "con_w2": w(keys[10], hidden_dim, 1),
        "con_b2": b(keys[11], hidden_dim, 1),
    }


def reference_forward(state, action, params):
    x = jnp.concatenate([state, action], axis=1)

    def mlp(x, w1, b1, w2, b2):
        h = jnp.maximum(x @ w1 + b1, 0.0)
        return h @ w2 + b2

    s = mlp(x, params["seq_w1"], params["seq_b1"], params["seq_w2"], params["seq_b2"])
    r = mlp(x, params["rew_w1"], params["rew_b1"], params["rew_w2"], params["rew_b2"])
    c = mlp(x, params["con_w1"], params["con_b1"], params["con_w2"], params["con_b2"])
    return s, r, c


if __name__ == "__main__":
    state_dim = 16
    action_dim = 4
    hidden_dim = 32
    batch = 8

    key = jax.random.PRNGKey(0)
    k_params, k_state, k_action = jax.random.split(key, 3)

    params = init_params(k_params, state_dim, action_dim, hidden_dim)
    packed = pack_params(params)  # one-time fusion of the three MLPs

    state = jax.random.normal(k_state, (batch, state_dim), jnp.float32)
    action = jax.random.normal(k_action, (batch, action_dim), jnp.float32)

    s_logits, r_logits, c_logits = simulator_v1_forward(state, action, packed)
    jax.block_until_ready((s_logits, r_logits, c_logits))

    # Correctness vs the unfused pure-JAX reference.
    s_ref, r_ref, c_ref = reference_forward(state, action, params)
    assert s_logits.shape == (batch, state_dim)
    assert r_logits.shape == (batch, 1)
    assert c_logits.shape == (batch, 1)
    assert jnp.allclose(s_logits, s_ref, atol=1e-5, rtol=1e-5)
    assert jnp.allclose(r_logits, r_ref, atol=1e-5, rtol=1e-5)
    assert jnp.allclose(c_logits, c_ref, atol=1e-5, rtol=1e-5)

    print("KERNEL_OK")
</pallas_src>

<mosaic_0001>
module attributes {stable_mosaic.version = 11 : i64} {
  func.func @simulator_kernel(%arg0: i32, %arg1: memref<8x16xf32, #tpu.memory_space<vmem>>, %arg2: memref<8x4xf32, #tpu.memory_space<vmem>>, %arg3: memref<16x96xf32, #tpu.memory_space<vmem>>, %arg4: memref<4x96xf32, #tpu.memory_space<vmem>>, %arg5: memref<1x96xf32, #tpu.memory_space<vmem>>, %arg6: memref<96x18xf32, #tpu.memory_space<vmem>>, %arg7: memref<1x18xf32, #tpu.memory_space<vmem>>, %arg8: memref<8x18xf32, #tpu.memory_space<vmem>>) attributes {dimension_semantics = [#tpu.dimension_semantics<parallel>], iteration_bounds = array<i64: 1>, scalar_prefetch = 0 : i64, scratch_operands = 0 : i64, tpu.core_type = #tpu.core_type<tc>, window_params = [{transform_indices = @transform_0, window_bounds = array<i64: 8, 16>}, {transform_indices = @transform_1, window_bounds = array<i64: 8, 4>}, {pipeline_mode = #tpu.pipeline_mode<synchronous>, transform_indices = @transform_2, window_bounds = array<i64: 16, 96>}, {pipeline_mode = #tpu.pipeline_mode<synchronous>, transform_indices = @transform_3, window_bounds = array<i64: 4, 96>}, {pipeline_mode = #tpu.pipeline_mode<synchronous>, transform_indices = @transform_4, window_bounds = array<i64: 1, 96>}, {pipeline_mode = #tpu.pipeline_mode<synchronous>, transform_indices = @transform_5, window_bounds = array<i64: 96, 18>}, {pipeline_mode = #tpu.pipeline_mode<synchronous>, transform_indices = @transform_6, window_bounds = array<i64: 1, 18>}, {transform_indices = @transform_7, window_bounds = array<i64: 8, 18>}]} {
    %c0 = arith.constant 0 : index
    %c0_0 = arith.constant 0 : index
    %0 = vector.load %arg1[%c0, %c0_0] : memref<8x16xf32, #tpu.memory_space<vmem>>, vector<8x16xf32>
    %c0_1 = arith.constant 0 : index
    %c0_2 = arith.constant 0 : index
    %1 = vector.load %arg3[%c0_1, %c0_2] : memref<16x96xf32, #tpu.memory_space<vmem>>, vector<16x96xf32>
    %cst = arith.constant dense<0.000000e+00> : vector<8x96xf32>
    %2 = tpu.matmul %0, %1, %cst {dimension_numbers = #tpu.dot_dimension_numbers<[1], [0], [0], [1], [0, 0, 1, 1], [], []>} : vector<8x16xf32>, vector<16x96xf32>, vector<8x96xf32> -> vector<8x96xf32>
    %c0_3 = arith.constant 0 : index
    %c0_4 = arith.constant 0 : index
    %3 = vector.load %arg2[%c0_3, %c0_4] : memref<8x4xf32, #tpu.memory_space<vmem>>, vector<8x4xf32>
    %c0_5 = arith.constant 0 : index
    %c0_6 = arith.constant 0 : index
    %4 = vector.load %arg4[%c0_5, %c0_6] : memref<4x96xf32, #tpu.memory_space<vmem>>, vector<4x96xf32>
    %cst_7 = arith.constant dense<0.000000e+00> : vector<8x96xf32>
    %5 = tpu.matmul %3, %4, %cst_7 {dimension_numbers = #tpu.dot_dimension_numbers<[1], [0], [0], [1], [0, 0, 1, 1], [], []>} : vector<8x4xf32>, vector<4x96xf32>, vector<8x96xf32> -> vector<8x96xf32>
    %6 = arith.addf %2, %5 : vector<8x96xf32>
    %c0_8 = arith.constant 0 : index
    %c0_9 = arith.constant 0 : index
    %7 = vector.load %arg5[%c0_8, %c0_9] : memref<1x96xf32, #tpu.memory_space<vmem>>, vector<1x96xf32>
    %8 = vector.broadcast %7 : vector<1x96xf32> to vector<8x96xf32>
    %9 = arith.addf %6, %8 : vector<8x96xf32>
    %cst_10 = arith.constant 0.000000e+00 : f32
    %10 = vector.broadcast %cst_10 : f32 to vector<8x96xf32>
    %11 = arith.maximumf %9, %10 : vector<8x96xf32>
    %c0_11 = arith.constant 0 : index
    %c0_12 = arith.constant 0 : index
    %12 = vector.load %arg6[%c0_11, %c0_12] : memref<96x18xf32, #tpu.memory_space<vmem>>, vector<96x18xf32>
    %cst_13 = arith.constant dense<0.000000e+00> : vector<8x18xf32>
    %13 = tpu.matmul %11, %12, %cst_13 {dimension_numbers = #tpu.dot_dimension_numbers<[1], [0], [0], [1], [0, 0, 1, 1], [], []>} : vector<8x96xf32>, vector<96x18xf32>, vector<8x18xf32> -> vector<8x18xf32>
    %c0_14 = arith.constant 0 : index
    %c0_15 = arith.constant 0 : index
    %14 = vector.load %arg7[%c0_14, %c0_15] : memref<1x18xf32, #tpu.memory_space<vmem>>, vector<1x18xf32>
    %15 = vector.broadcast %14 : vector<1x18xf32> to vector<8x18xf32>
    %16 = arith.addf %13, %15 : vector<8x18xf32>
    %c0_16 = arith.constant 0 : index
    %c0_17 = arith.constant 0 : index
    %17 = vector.load %arg8[%c0_16, %c0_17] : memref<8x18xf32, #tpu.memory_space<vmem>>, vector<8x18xf32>
    tpu.vector_store %arg8[%c0_16, %c0_17], %16 {strides = array<i32>} : memref<8x18xf32, #tpu.memory_space<vmem>>, vector<8x18xf32>,
    return
  }
  func.func @transform_0(%arg0: i32) -> (i32, i32) {
    %c0_i32 = arith.constant 0 : i32
    %c0_i32_0 = arith.constant 0 : i32
    return %arg0, %c0_i32 : i32, i32
  }
  func.func @transform_1(%arg0: i32) -> (i32, i32) {
    %c0_i32 = arith.constant 0 : i32
    %c0_i32_0 = arith.constant 0 : i32
    return %arg0, %c0_i32 : i32, i32
  }
  func.func @transform_2(%arg0: i32) -> (i32, i32) {
    %c0_i32 = arith.constant 0 : i32
    %c0_i32_0 = arith.constant 0 : i32
    %c0_i32_1 = arith.constant 0 : i32
    return %c0_i32, %c0_i32_0 : i32, i32
  }
  func.func @transform_3(%arg0: i32) -> (i32, i32) {
    %c0_i32 = arith.constant 0 : i32
    %c0_i32_0 = arith.constant 0 : i32
    %c0_i32_1 = arith.constant 0 : i32
    return %c0_i32, %c0_i32_0 : i32, i32
  }
  func.func @transform_4(%arg0: i32) -> (i32, i32) {
    %c0_i32 = arith.constant 0 : i32
    %c0_i32_0 = arith.constant 0 : i32
    %c0_i32_1 = arith.constant 0 : i32
    return %c0_i32, %c0_i32_0 : i32, i32
  }
  func.func @transform_5(%arg0: i32) -> (i32, i32) {
    %c0_i32 = arith.constant 0 : i32
    %c0_i32_0 = arith.constant 0 : i32
    %c0_i32_1 = arith.constant 0 : i32
    return %c0_i32, %c0_i32_0 : i32, i32
  }
  func.func @transform_6(%arg0: i32) -> (i32, i32) {
    %c0_i32 = arith.constant 0 : i32
    %c0_i32_0 = arith.constant 0 : i32
    %c0_i32_1 = arith.constant 0 : i32
    return %c0_i32, %c0_i32_0 : i32, i32
  }
  func.func @transform_7(%arg0: i32) -> (i32, i32) {
    %c0_i32 = arith.constant 0 : i32
    %c0_i32_0 = arith.constant 0 : i32
    return %arg0, %c0_i32 : i32, i32
  }
}

</mosaic_0001>

<llo_original>
// kernel: tpu_custom_call.1
$region0: #{tpu_custom_call.1}
  #allocation0 [shape = 'u32[]', space=smem, size = 0x4, offset = 0x4, fixed_abs, tag = 'smem constant byte address 0x4 - core index']
  #allocation1 [shape = 'u32[144,128]{1,0:T(1,128)}', space=vmem, size = 0x12000, scoped, tag = 'internal scratch']
  %s0 = inlined_call_operand.vmem [shape: f32[8,16], index: 0, kind: input, shape index: {}]
  %s1 = inlined_call_operand.vmem [shape: f32[8,4], index: 1, kind: input, shape index: {}]
  %s2 = inlined_call_operand.vmem [shape: f32[16,96], index: 2, kind: input, shape index: {}]
  %s3 = inlined_call_operand.vmem [shape: f32[4,96], index: 3, kind: input, shape index: {}]
  %s4 = inlined_call_operand.vmem [shape: f32[1,96], index: 4, kind: input, shape index: {}]
  %s5 = inlined_call_operand.vmem [shape: f32[96,18], index: 5, kind: input, shape index: {}]
  %s6 = inlined_call_operand.vmem [shape: f32[1,18], index: 6, kind: input, shape index: {}]
  %s7 = inlined_call_operand.hbm [shape: f32[8,18], index: 7, kind: output, shape index: {}]
  %s8 = sld [smem:[#allocation0]]
  $region38: #{tpu_custom_call.1} parent=0
    _
  %s10 = ssub.s32 1, %s8
  %s11 = scalar_select 0, %s10, %s8
  $region1: #{tpu_custom_call.1} parent=0
    #allocation2 [shape = 'u8[4096]{0}', space=vmem, size = 0x1000, scoped, tag = 'output window, operand 0, single buffered']
    #allocation3 [shape = 's32[1]{0}', space=sflag, size = 0x4, scoped, tag = 'scoped memory for tpu_custom_call.1']
    %12 = vsyncpa [#allocation3], 0
    // Predicated region
    $region2: #{tpu_custom_call.1} parent=1 // pred_check
      _
    $region3: #{tpu_custom_call.1} parent=1 // pred_check_branch
      %14 = sbr.rel (0) target = $region5
    $region4: #{tpu_custom_call.1} parent=1 // pred_region
      _
    $region5: #{tpu_custom_call.1} parent=1 // pred_fallthru
      _
    // Predicated region
    $region6: #{tpu_custom_call.1} parent=1 // pred_check
      _
    $region7: #{tpu_custom_call.1} parent=1 // pred_check_branch
      %16 = sbr.rel (0) target = $region9
    $region8: #{tpu_custom_call.1} parent=1 // pred_region
      _
    $region9: #{tpu_custom_call.1} parent=1 // pred_fallthru
      _
    // Predicated region
    $region10: #{tpu_custom_call.1} parent=1 // pred_check
      _
    $region11: #{tpu_custom_call.1} parent=1 // pred_check_branch
      %18 = sbr.rel (0) target = $region13
    $region12: #{tpu_custom_call.1} parent=1 // pred_region
      _
    $region13: #{tpu_custom_call.1} parent=1 // pred_fallthru
      _
    // Predicated region
    $region14: #{tpu_custom_call.1} parent=1 // pred_check
      _
    $region15: #{tpu_custom_call.1} parent=1 // pred_check_branch
      %20 = sbr.rel (0) target = $region17
    $region16: #{tpu_custom_call.1} parent=1 // pred_region
      _
    $region17: #{tpu_custom_call.1} parent=1 // pred_fallthru
      _
    // Predicated region
    $region18: #{tpu_custom_call.1} parent=1 // pred_check
      _
    $region19: #{tpu_custom_call.1} parent=1 // pred_check_branch
      %22 = sbr.rel (0) target = $region21
    $region20: #{tpu_custom_call.1} parent=1 // pred_region
      _
    $region21: #{tpu_custom_call.1} parent=1 // pred_fallthru
      _
    // Predicated region
    $region22: #{tpu_custom_call.1} parent=1 // pred_check
      _
    $region23: #{tpu_custom_call.1} parent=1 // pred_check_branch
      %24 = sbr.rel (0) target = $region25
    $region24: #{tpu_custom_call.1} parent=1 // pred_region
      _
    $region25: #{tpu_custom_call.1} parent=1 // pred_fallthru
      _
    // Predicated region
    $region26: #{tpu_custom_call.1} parent=1 // pred_check
      _
    $region27: #{tpu_custom_call.1} parent=1 // pred_check_branch
      %26 = sbr.rel (0) target = $region29
    $region28: #{tpu_custom_call.1} parent=1 // pred_region
      _
    $region29: #{tpu_custom_call.1} parent=1 // pred_fallthru
      _
    %v27 = vld [vmem:[%s0] sm:$0xff]
    %v28 = vld [vmem:[%s2] sm:$0xff]
    %v29 = vld [vmem:[%s2 + $0x8] sm:$0xff]
    %v30 = vld [vmem:[%s1] sm:$0xff]
    %v31 = vld [vmem:[%s3] sm:$0xf]
    %vm32 = vcmask 31744
    %v34 = vsel %vm32, %v30, 0
    %vm36 = vcmask 1043456
    %v38 = vsel %vm36, %v31, 0
    %40 = vmatprep.subr.mxu0 0.0
    %41 = vmatpush1.msra.mxu0 %v38
    %42 = vmatprep.subr.mxu0 0.0
    %43 = vmatpush1.msra.mxu0 0.0
    %44 = vmatprep.subr.mxu0 0.0
    %45 = vmatpush1.msra.mxu0 0.0
    %46 = vmatprep.subr.mxu0 0.0
    %47 = vmatpush1.msra.mxu0 0.0
    %48 = vmatprep.subr.mxu0 0.0
    %49 = vmatpush1.msra.mxu0 0.0
    %50 = vmatprep.subr.mxu0 0.0
    %51 = vmatpush1.msra.mxu0 0.0
    %52 = vmatprep.subr.mxu0 0.0
    %53 = vmatpush1.msra.mxu0 0.0
    %54 = vmatprep.subr.mxu0 0.0
    %55 = vmatpush1.msra.mxu0 0.0
    %56 = vmatprep.subr.mxu0 0.0
    %57 = vmatpush1.msra.mxu0 0.0
    %58 = vmatprep.subr.mxu0 0.0
    %59 = vmatpush1.msra.mxu0 0.0
    %60 = vmatprep.subr.mxu0 0.0
    %61 = vmatpush1.msra.mxu0 0.0
    %62 = vmatprep.subr.mxu0 0.0
    %63 = vmatpush1.msra.mxu0 0.0
    %64 = vmatprep.subr.mxu0 0.0
    %65 = vmatpush1.msra.mxu0 0.0
    %66 = vmatprep.subr.mxu0 0.0
    %67 = vmatpush1.msra.mxu0 0.0
    %68 = vmatprep.subr.mxu0 0.0
    %69 = vmatpush1.msra.mxu0 0.0
    %70 = vmatprep.subr.mxu0 0.0
    %71 = vmatpush1.msra.mxu0 0.0
    %72 = vmatprep.subr.mxu0 0.0
    %73 = vmatpush1.msra.mxu0 0.0
    %74 = vmatprep.subr.mxu0 0.0
    %75 = vmatpush1.msra.mxu0 0.0
    %76 = vmatprep.subr.mxu0 0.0
    %77 = vmatpush1.msra.mxu0 0.0
    %78 = vmatprep.subr.mxu0 0.0
    %79 = vmatpush1.msra.mxu0 0.0
    %80 = vmatprep.subr.mxu0 0.0
    %81 = vmatpush1.msra.mxu0 0.0
    %82 = vmatprep.subr.mxu0 0.0
    %83 = vmatpush1.msra.mxu0 0.0
    %84 = vmatprep.subr.mxu0 0.0
    %85 = vmatpush1.msra.mxu0 0.0
    %86 = vmatprep.subr.mxu0 0.0
    %87 = vmatpush1.msra.mxu0 0.0
    %88 = vmatprep.subr.mxu0 0.0
    %89 = vmatpush1.msra.mxu0 0.0
    %90 = vmatprep.subr.mxu0 0.0
    %91 = vmatpush1.msra.mxu0 0.0
    %92 = vmatprep.subr.mxu0 0.0
    %93 = vmatpush1.msra.mxu0 0.0
    %94 = vmatprep.subr.mxu0 0.0
    %95 = vmatpush1.msra.mxu0 0.0
    %96 = vmatprep.subr.mxu0 0.0
    %97 = vmatpush1.msra.mxu0 0.0
    %98 = vmatprep.subr.mxu0 0.0
    %99 = vmatpush1.msra.mxu0 0.0
    %100 = vmatprep.subr.mxu0 0.0
    %101 = vmatpush1.msra.mxu0 0.0
    %102 = vmatprep.subr.mxu0 0.0
    %103 = vmatpush1.msra.mxu0 0.0
    %104 = vmatprep.mubr.f32.mxu0 0.0
    %105 = vmatmul.mubr.f32.gmra.mrb[0].mxu0 %v34
    %v106 = vpop.f32.mrb[0].mxu0
    %v107 = vadd.f32 0.0, %v106
    %v108 = vpop.f32.mrb[0].mxu0
    %109 = vdwg.mxu0
    %vm110 = vcmask 130048
    %v112 = vsel %vm110, %v27, 0
    %114 = vmatprep.subr.mxu0 0.0
    %115 = vmatpush1.msra.mxu0 %v28
    %116 = vmatprep.subr.mxu0 0.0
    %117 = vmatpush1.msra.mxu0 %v29
    %118 = vmatprep.subr.mxu0 0.0
    %119 = vmatpush1.msra.mxu0 0.0
    %120 = vmatprep.subr.mxu0 0.0
    %121 = vmatpush1.msra.mxu0 0.0
    %122 = vmatprep.subr.mxu0 0.0
    %123 = vmatpush1.msra.mxu0 0.0
    %124 = vmatprep.subr.mxu0 0.0
    %125 = vmatpush1.msra.mxu0 0.0
    %126 = vmatprep.subr.mxu0 0.0
    %127 = vmatpush1.msra.mxu0 0.0
    %128 = vmatprep.subr.mxu0 0.0
    %129 = vmatpush1.msra.mxu0 0.0
    %130 = vmatprep.subr.mxu0 0.0
    %131 = vmatpush1.msra.mxu0 0.0
    %132 = vmatprep.subr.mxu0 0.0
    %133 = vmatpush1.msra.mxu0 0.0
    %134 = vmatprep.subr.mxu0 0.0
    %135 = vmatpush1.msra.mxu0 0.0
    %136 = vmatprep.subr.mxu0 0.0
    %137 = vmatpush1.msra.mxu0 0.0
    %138 = vmatprep.subr.mxu0 0.0
    %139 = vmatpush1.msra.mxu0 0.0
    %140 = vmatprep.subr.mxu0 0.0
    %141 = vmatpush1.msra.mxu0 0.0
    %142 = vmatprep.subr.mxu0 0.0
    %143 = vmatpush1.msra.mxu0 0.0
    %144 = vmatprep.subr.mxu0 0.0
    %145 = vmatpush1.msra.mxu0 0.0
    %146 = vmatprep.subr.mxu0 0.0
    %147 = vmatpush1.msra.mxu0 0.0
    %148 = vmatprep.subr.mxu0 0.0
    %149 = vmatpush1.msra.mxu0 0.0
    %150 = vmatprep.subr.mxu0 0.0
    %151 = vmatpush1.msra.mxu0 0.0
    %152 = vmatprep.subr.mxu0 0.0
    %153 = vmatpush1.msra.mxu0 0.0
    %154 = vmatprep.subr.mxu0 0.0
    %155 = vmatpush1.msra.mxu0 0.0
    %156 = vmatprep.subr.mxu0 0.0
    %157 = vmatpush1.msra.mxu0 0.0
    %158 = vmatprep.subr.mxu0 0.0
    %159 = vmatpush1.msra.mxu0 0.0
    %160 = vmatprep.subr.mxu0 0.0
    %161 = vmatpush1.msra.mxu0 0.0
    %162 = vmatprep.subr.mxu0 0.0
    %163 = vmatpush1.msra.mxu0 0.0
    %164 = vmatprep.subr.mxu0 0.0
    %165 = vmatpush1.msra.mxu0 0.0
    %166 = vmatprep.subr.mxu0 0.0
    %167 = vmatpush1.msra.mxu0 0.0
    %168 = vmatprep.subr.mxu0 0.0
    %169 = vmatpush1.msra.mxu0 0.0
    %170 = vmatprep.subr.mxu0 0.0
    %171 = vmatpush1.msra.mxu0 0.0
    %172 = vmatprep.subr.mxu0 0.0
    %173 = vmatpush1.msra.mxu0 0.0
    %174 = vmatprep.subr.mxu0 0.0
    %175 = vmatpush1.msra.mxu0 0.0
    %176 = vmatprep.subr.mxu0 0.0
    %177 = vmatpush1.msra.mxu0 0.0
    %178 = vmatprep.mubr.f32.mxu0 0.0
    %179 = vmatmul.mubr.f32.gmra.mrb[0].mxu0 %v112
    %v180 = vpop.f32.mrb[0].mxu0
    %v181 = vadd.f32 %v107, %v180
    %v182 = vpop.f32.mrb[0].mxu0
    %183 = vdwg.mxu0
    %v184 = vld [vmem:[%s4] sm:$0x1]
    %v186 = vlaneseq
    %v187 = vshrl.u32 %v186, 7
    %v188 = vsub.s32 0, %v187
    %v189 = vrot.slane %v184, %v188
    %v191 = vadd.f32 %v181, %v189
    %v192 = vmax.f32 %v191, 0.0
    %v193 = vld [vmem:[%s5] sm:$0xff]
    %v194 = vld [vmem:[%s5 + $0x8] sm:$0xff]
    %v195 = vld [vmem:[%s5 + $0x10] sm:$0xff]
    %v196 = vld [vmem:[%s5 + $0x18] sm:$0xff]
    %v197 = vld [vmem:[%s5 + $0x20] sm:$0xff]
    %v198 = vld [vmem:[%s5 + $0x28] sm:$0xff]
    %v199 = vld [vmem:[%s5 + $0x30] sm:$0xff]
    %v200 = vld [vmem:[%s5 + $0x38] sm:$0xff]
    %v201 = vld [vmem:[%s5 + $0x40] sm:$0xff]
    %v202 = vld [vmem:[%s5 + $0x48] sm:$0xff]
    %v203 = vld [vmem:[%s5 + $0x50] sm:$0xff]
    %v204 = vld [vmem:[%s5 + $0x58] sm:$0xff]
    %v205 = vld [vmem:[%s6] sm:$0x1]
    %v207 = vlaneseq
    %v208 = vshrl.u32 %v207, 7
    %v209 = vsub.s32 0, %v208
    %v210 = vrot.slane %v205, %v209
    %vm212 = vcmask 785408
    %v214 = vsel %vm212, %v192, 0
    %216 = vmatprep.subr.mxu0 0.0
    %217 = vmatpush1.msra.mxu0 %v193
    %218 = vmatprep.subr.mxu0 0.0
    %219 = vmatpush1.msra.mxu0 %v194
    %220 = vmatprep.subr.mxu0 0.0
    %221 = vmatpush1.msra.mxu0 %v195
    %222 = vmatprep.subr.mxu0 0.0
    %223 = vmatpush1.msra.mxu0 %v196
    %224 = vmatprep.subr.mxu0 0.0
    %225 = vmatpush1.msra.mxu0 %v197
    %226 = vmatprep.subr.mxu0 0.0
    %227 = vmatpush1.msra.mxu0 %v198
    %228 = vmatprep.subr.mxu0 0.0
    %229 = vmatpush1.msra.mxu0 %v199
    %230 = vmatprep.subr.mxu0 0.0
    %231 = vmatpush1.msra.mxu0 %v200
    %232 = vmatprep.subr.mxu0 0.0
    %233 = vmatpush1.msra.mxu0 %v201
    %234 = vmatprep.subr.mxu0 0.0
    %235 = vmatpush1.msra.mxu0 %v202
    %236 = vmatprep.subr.mxu0 0.0
    %237 = vmatpush1.msra.mxu0 %v203
    %238 = vmatprep.subr.mxu0 0.0
    %239 = vmatpush1.msra.mxu0 %v204
    %240 = vmatprep.subr.mxu0 0.0
    %241 = vmatpush1.msra.mxu0 0.0
    %242 = vmatprep.subr.mxu0 0.0
    %243 = vmatpush1.msra.mxu0 0.0
    %244 = vmatprep.subr.mxu0 0.0
    %245 = vmatpush1.msra.mxu0 0.0
    %246 = vmatprep.subr.mxu0 0.0
    %247 = vmatpush1.msra.mxu0 0.0
    %248 = vmatprep.subr.mxu0 0.0
    %249 = vmatpush1.msra.mxu0 0.0
    %250 = vmatprep.subr.mxu0 0.0
    %251 = vmatpush1.msra.mxu0 0.0
    %252 = vmatprep.subr.mxu0 0.0
    %253 = vmatpush1.msra.mxu0 0.0
    %254 = vmatprep.subr.mxu0 0.0
    %255 = vmatpush1.msra.mxu0 0.0
    %256 = vmatprep.subr.mxu0 0.0
    %257 = vmatpush1.msra.mxu0 0.0
    %258 = vmatprep.subr.mxu0 0.0
    %259 = vmatpush1.msra.mxu0 0.0
    %260 = vmatprep.subr.mxu0 0.0
    %261 = vmatpush1.msra.mxu0 0.0
    %262 = vmatprep.subr.mxu0 0.0
    %263 = vmatpush1.msra.mxu0 0.0
    %264 = vmatprep.subr.mxu0 0.0
    %265 = vmatpush1.msra.mxu0 0.0
    %266 = vmatprep.subr.mxu0 0.0
    %267 = vmatpush1.msra.mxu0 0.0
    %268 = vmatprep.subr.mxu0 0.0
    %269 = vmatpush1.msra.mxu0 0.0
    %270 = vmatprep.subr.mxu0 0.0
    %271 = vmatpush1.msra.mxu0 0.0
    %272 = vmatprep.subr.mxu0 0.0
    %273 = vmatpush1.msra.mxu0 0.0
    %274 = vmatprep.subr.mxu0 0.0
    %275 = vmatpush1.msra.mxu0 0.0
    %276 = vmatprep.subr.mxu0 0.0
    %277 = vmatpush1.msra.mxu0 0.0
    %278 = vmatprep.subr.mxu0 0.0
    %279 = vmatpush1.msra.mxu0 0.0
    %280 = vmatprep.mubr.f32.mxu0 0.0
    %281 = vmatmul.mubr.f32.gmra.mrb[0].mxu0 %v214
    %v282 = vpop.f32.mrb[0].mxu0
    %v283 = vadd.f32 %v210, %v282
    %v284 = vpop.f32.mrb[0].mxu0
    %285 = vdwg.mxu0
    %vm286 = vcmask 146432
    %287 = vst.msk [vmem:[#allocation2] sm:$0xff] %vm286, %v283
    // Predicated region
    $region30: #{tpu_custom_call.1} parent=1 // pred_check
      _
    $region31: #{tpu_custom_call.1} parent=1 // pred_check_branch
      %289 = sbr.rel (0) target = $region33
    $region32: #{tpu_custom_call.1} parent=1 // pred_region
      %s291 = ssub.s32 128, 128
      %292 = vsyncadd [#allocation3], %s291
      %s294 = sshll.u32 [#allocation2], 4
      %s295 = int_to_ptr.vmem [resolvable:$true] %s294
      %297 = dma.vmem_to_hbm [thread:$0]  %s295, 128, %s7, [#allocation3]
    $region33: #{tpu_custom_call.1} parent=1 // pred_fallthru
      _
    // Predicated region
    $region34: #{tpu_custom_call.1} parent=1 // pred_check
      _
    $region35: #{tpu_custom_call.1} parent=1 // pred_check_branch
      %299 = sbr.rel (0) target = $region37
    $region36: #{tpu_custom_call.1} parent=1 // pred_region
      %300 = dma.done [#allocation3], 128
    $region37: #{tpu_custom_call.1} parent=1 // pred_fallthru
      _
    %301 = vsyncpa [#allocation3], 1

</llo_original>
